<compile_context>
chip_gen: v5e
topology: v5e:2x2
jax: 0.10.0
libtpu: 0.0.40
codegen_flags: <defaults>
</compile_context>

<pallas_src>
import functools

import jax
import jax.numpy as jnp
from jax.experimental import pallas as pl
from jax.experimental.pallas import tpu as pltpu


def _round_up(v, m):
    return (v + m - 1) // m * m


def _channel_attention_kernel(x_ref, o_ref, sum_sc, max_sc, *, inv_hw, hw,
                              ragged_tail):
    """One (row_tile, hw_tile) block.  Grid = (row tiles, hw chunks)."""
    k = pl.program_id(1)
    hw_tile = x_ref.shape[-1]

    @pl.when(k == 0)
    def _init():
        sum_sc[...] = jnp.zeros_like(sum_sc)
        max_sc[...] = jnp.full_like(max_sc, -jnp.inf)

    x = x_ref[...]
    if ragged_tail:
        # Only the last hw chunk can extend past hw; for earlier chunks the
        # mask is all-true.  A (1, hw_tile) iota keeps the mask temp tiny.
        lane = jax.lax.broadcasted_iota(jnp.int32, (1, hw_tile), 1)
        n_valid = hw - k * hw_tile          # >= hw_tile for every k < last
        valid = lane < n_valid
        x_sum = jnp.where(valid, x, jnp.array(0, dtype=x.dtype)).astype(jnp.float32)
        x_max = jnp.where(valid, x, jnp.array(-jnp.inf, dtype=x.dtype))
    else:
        x_sum = x.astype(jnp.float32)       # f32 accumulation (no-op for f32)
        x_max = x                           # max reduced in the input dtype

    sum_sc[...] += jnp.sum(x_sum, axis=-1, keepdims=True)
    max_sc[...] = jnp.maximum(
        max_sc[...], jnp.max(x_max, axis=-1, keepdims=True).astype(jnp.float32))

    @pl.when(k == pl.num_programs(1) - 1)
    def _done():
        o_ref[...] = jax.nn.sigmoid(
            sum_sc[...] * jnp.float32(inv_hw) + max_sc[...]
        ).astype(o_ref.dtype)


def _hw_budget(itemsize):
    """Generation-aware budgets: (block element budget, vmem_limit_bytes, two_cores)."""
    vmem_cap = None
    try:
        info = pltpu.get_tpu_info()
        vmem_cap = getattr(info, "vmem_capacity_bytes", None)
    except Exception:
        vmem_cap = None

    if vmem_cap is not None and vmem_cap >= 100 * 2**20:
        # v5e / v6e: 128 MiB physical VMEM, one TensorCore per chip.
        total, vmem_limit, two_cores = 48 * 2**20, 64 * 2**20, False
    else:
        # v7x (64 MiB VMEM, 2 TCs) or unknown: numbers safe on every generation.
        total, vmem_limit, two_cores = 38 * 2**20, 48 * 2**20, True

    reserve = 2 * 2**20
    # Per element: 2x double-buffered input + one possible same-dtype mask temp
    # + one possible f32 cast temp (bf16 sum path / ragged mask path).
    elem_budget = (total - reserve) // (3 * itemsize + 4)
    return elem_budget, vmem_limit, two_cores


def _choose_tiles(rows, hw, itemsize, elem_budget, two_cores):
    """Pick (row_tile, hw_tile, ragged_tail) honoring the (8/16, 128) layout."""
    align = 16 if itemsize == 2 else 8          # bf16 packs two rows per sublane
    rows_rounded = _round_up(rows, align)
    lane_hw = _round_up(hw, 128)                # lanes actually occupied per row

    # Row tile first: as many rows as the budget allows at full hw; cap at 256
    # rows when hw must be chunked so per-row DMA segments stay long.
    if align * lane_hw <= elem_budget:
        row_tile = min((elem_budget // lane_hw) // align * align, rows_rounded)
    else:
        row_tile = min(rows_rounded, 256)
    # Megacore: make sure the parallel row axis has >= 2 tiles when rows permit.
    if two_cores and row_tile >= rows_rounded and rows_rounded >= 2 * align:
        row_tile = _round_up((rows_rounded + 1) // 2, align)

    # hw tile: prefer the full extent (single chunk, fully contiguous slab).
    lanes_budget = max(128, (elem_budget // row_tile) // 128 * 128)
    if lane_hw <= lanes_budget:
        return row_tile, hw, False
    cap = lanes_budget
    if hw % cap == 0:
        return row_tile, cap, False
    # Look for a large 128-multiple divisor of hw near the budget.
    for cand in range(cap, max(cap // 2, 128) - 1, -128):
        if hw % cand == 0:
            return row_tile, cand, False
    # No good divisor: keep the big chunk and mask the ragged tail in-kernel.
    return row_tile, cap, True


def channel_attention(x, *, _elem_budget=None):
    """x: (B, C, H, W) NCHW.  Returns sigmoid(avgpool(x) + maxpool(x)), (B, C, 1, 1)."""
    B, C, H, W = x.shape
    rows = B * C
    hw = H * W
    x2d = x.reshape(rows, hw)

    itemsize = jnp.dtype(x.dtype).itemsize
    elem_budget, vmem_limit, two_cores = _hw_budget(itemsize)
    if _elem_budget is not None:            # test hook: force small tiles
        elem_budget = _elem_budget
    row_tile, hw_tile, ragged = _choose_tiles(rows, hw, itemsize, elem_budget,
                                              two_cores)
    grid = (pl.cdiv(rows, row_tile), pl.cdiv(hw, hw_tile))

    kernel = functools.partial(_channel_attention_kernel,
                               inv_hw=1.0 / float(hw), hw=hw,
                               ragged_tail=ragged)

    out2d = pl.pallas_call(
        kernel,
        out_shape=jax.ShapeDtypeStruct((rows, 1), x.dtype),
        grid_spec=pltpu.PrefetchScalarGridSpec(
            num_scalar_prefetch=0,
            grid=grid,
            in_specs=[pl.BlockSpec((row_tile, hw_tile), lambda i, k: (i, k))],
            out_specs=pl.BlockSpec((row_tile, 1), lambda i, k: (i, 0)),
            scratch_shapes=[
                pltpu.VMEM((row_tile, 1), jnp.float32),   # running sum
                pltpu.VMEM((row_tile, 1), jnp.float32),   # running max
            ],
        ),
        compiler_params=pltpu.CompilerParams(
            # Row tiles are independent -> parallel (sharded over v7x's 2 TCs);
            # hw is a reduction axis -> arbitrary, kept last.
            dimension_semantics=("parallel", "arbitrary"),
            vmem_limit_bytes=vmem_limit,
        ),
    )(x2d)

    return out2d.reshape(B, C, 1, 1)


def _reference(x):
    xf = x.astype(jnp.float32)
    return jax.nn.sigmoid(
        jnp.mean(xf, axis=(2, 3), keepdims=True)
        + jnp.max(xf, axis=(2, 3), keepdims=True)
    ).astype(x.dtype)


if __name__ == "__main__":
    key = jax.random.PRNGKey(0)
    k1, k2, k3, k4 = jax.random.split(key, 4)

    # 1) Small canonical shape (single tile, full-hw block path).
    x1 = jax.random.normal(k1, (2, 4, 16, 16), dtype=jnp.float32)
    o1 = channel_attention(x1)
    jax.block_until_ready(o1)
    assert o1.shape == (2, 4, 1, 1)
    assert jnp.allclose(o1, _reference(x1), atol=1e-5, rtol=1e-5)

    # 2) bf16 input with a row count that is not a multiple of the row tile.
    x2 = jax.random.normal(k2, (2, 5, 24, 24), dtype=jnp.bfloat16)
    o2 = channel_attention(x2)
    jax.block_until_ready(o2)
    assert jnp.allclose(o2.astype(jnp.float32), _reference(x2).astype(jnp.float32),
                        atol=1e-2, rtol=1e-2)

    # 3) Many rows -> exercises the parallel row axis.
    x3 = jax.random.normal(k3, (2, 96, 24, 24), dtype=jnp.float32)
    o3 = channel_attention(x3)
    jax.block_until_ready(o3)
    assert jnp.allclose(o3, _reference(x3), atol=1e-5, rtol=1e-5)

    # 4) Forced tiny budget -> hw chunking with a ragged (masked) last chunk
    #    plus a partial row tile, on a small input.
    x4 = jax.random.normal(k4, (2, 10, 20, 20), dtype=jnp.float32)
    o4 = channel_attention(x4, _elem_budget=2048)
    jax.block_until_ready(o4)
    assert jnp.allclose(o4, _reference(x4), atol=1e-5, rtol=1e-5)

    print("KERNEL_OK")
</pallas_src>

<mosaic_0001>
module attributes {stable_mosaic.version = 11 : i64} {
  func.func @_channel_attention_kernel(%arg0: i32, %arg1: i32, %arg2: memref<8x256xf32, #tpu.memory_space<vmem>>, %arg3: memref<8x1xf32, #tpu.memory_space<vmem>>, %arg4: memref<8x1xf32, #tpu.memory_space<vmem>>, %arg5: memref<8x1xf32, #tpu.memory_space<vmem>>) attributes {dimension_semantics = [#tpu.dimension_semantics<parallel>, #tpu.dimension_semantics<arbitrary>], iteration_bounds = array<i64: 1, 1>, scalar_prefetch = 0 : i64, scratch_operands = 2 : i64, tpu.core_type = #tpu.core_type<tc>, window_params = [{transform_indices = @transform_0, window_bounds = array<i64: 8, 256>}, {transform_indices = @transform_1, window_bounds = array<i64: 8, 1>}]} {
    %c0_i32 = arith.constant 0 : i32
    %0 = arith.cmpi eq, %arg1, %c0_i32 : i32
    %1 = arith.extui %0 : i1 to i32
    %c0_i32_0 = arith.constant 0 : i32
    %2 = arith.cmpi ne, %1, %c0_i32_0 : i32
    scf.if %2 {
      %cst_13 = arith.constant 0.000000e+00 : f32
      %17 = vector.broadcast %cst_13 : f32 to vector<8x1xf32>
      %c0_14 = arith.constant 0 : index
      %c0_15 = arith.constant 0 : index
      %18 = vector.load %arg4[%c0_14, %c0_15] : memref<8x1xf32, #tpu.memory_space<vmem>>, vector<8x1xf32>
      tpu.vector_store %arg4[%c0_14, %c0_15], %17 {strides = array<i32>} : memref<8x1xf32, #tpu.memory_space<vmem>>, vector<8x1xf32>,
      %cst_16 = arith.constant 0xFF800000 : f32
      %19 = vector.broadcast %cst_16 : f32 to vector<8x1xf32>
      %c0_17 = arith.constant 0 : index
      %c0_18 = arith.constant 0 : index
      %20 = vector.load %arg5[%c0_17, %c0_18] : memref<8x1xf32, #tpu.memory_space<vmem>>, vector<8x1xf32>
      tpu.vector_store %arg5[%c0_17, %c0_18], %19 {strides = array<i32>} : memref<8x1xf32, #tpu.memory_space<vmem>>, vector<8x1xf32>,
    } else {
    }
    %c0 = arith.constant 0 : index
    %c0_1 = arith.constant 0 : index
    %3 = vector.load %arg2[%c0, %c0_1] : memref<8x256xf32, #tpu.memory_space<vmem>>, vector<8x256xf32>
    %c0_2 = arith.constant 0 : index
    %c0_3 = arith.constant 0 : index
    %4 = vector.load %arg4[%c0_2, %c0_3] : memref<8x1xf32, #tpu.memory_space<vmem>>, vector<8x1xf32>
    %cst = arith.constant dense<0.000000e+00> : vector<8xf32>
    %5 = vector.multi_reduction <add>, %3, %cst [1] : vector<8x256xf32> to vector<8xf32>
    %6 = vector.shape_cast %5 : vector<8xf32> to vector<8x1xf32>
    %7 = arith.addf %4, %6 : vector<8x1xf32>
    %c0_4 = arith.constant 0 : index
    %c0_5 = arith.constant 0 : index
    %8 = vector.load %arg4[%c0_4, %c0_5] : memref<8x1xf32, #tpu.memory_space<vmem>>, vector<8x1xf32>
    tpu.vector_store %arg4[%c0_4, %c0_5], %7 {strides = array<i32>} : memref<8x1xf32, #tpu.memory_space<vmem>>, vector<8x1xf32>,
    %c0_6 = arith.constant 0 : index
    %c0_7 = arith.constant 0 : index
    %9 = vector.load %arg5[%c0_6, %c0_7] : memref<8x1xf32, #tpu.memory_space<vmem>>, vector<8x1xf32>
    %cst_8 = arith.constant dense<0xFF800000> : vector<8xf32>
    %10 = vector.multi_reduction <maximumf>, %3, %cst_8 [1] : vector<8x256xf32> to vector<8xf32>
    %11 = vector.shape_cast %10 : vector<8xf32> to vector<8x1xf32>
    %12 = arith.maximumf %9, %11 : vector<8x1xf32>
    %c0_9 = arith.constant 0 : index
    %c0_10 = arith.constant 0 : index
    %13 = vector.load %arg5[%c0_9, %c0_10] : memref<8x1xf32, #tpu.memory_space<vmem>>, vector<8x1xf32>
    tpu.vector_store %arg5[%c0_9, %c0_10], %12 {strides = array<i32>} : memref<8x1xf32, #tpu.memory_space<vmem>>, vector<8x1xf32>,
    %c0_i32_11 = arith.constant 0 : i32
    %14 = arith.cmpi eq, %arg1, %c0_i32_11 : i32
    %15 = arith.extui %14 : i1 to i32
    %c0_i32_12 = arith.constant 0 : i32
    %16 = arith.cmpi ne, %15, %c0_i32_12 : i32
    scf.if %16 {
      %c0_13 = arith.constant 0 : index
      %c0_14 = arith.constant 0 : index
      %17 = vector.load %arg4[%c0_13, %c0_14] : memref<8x1xf32, #tpu.memory_space<vmem>>, vector<8x1xf32>
      %cst_15 = arith.constant 3.906250e-03 : f32
      %18 = vector.broadcast %cst_15 : f32 to vector<8x1xf32>
      %19 = arith.mulf %17, %18 : vector<8x1xf32>
      %c0_16 = arith.constant 0 : index
      %c0_17 = arith.constant 0 : index
      %20 = vector.load %arg5[%c0_16, %c0_17] : memref<8x1xf32, #tpu.memory_space<vmem>>, vector<8x1xf32>
      %21 = arith.addf %19, %20 : vector<8x1xf32>
      %22 = arith.negf %21 : vector<8x1xf32>
      %23 = math.exp %22 : vector<8x1xf32>
      %cst_18 = arith.constant 1.000000e+00 : f32
      %24 = vector.broadcast %cst_18 : f32 to vector<8x1xf32>
      %25 = arith.addf %24, %23 : vector<8x1xf32>
      %26 = arith.divf %24, %25 : vector<8x1xf32>
      %c0_19 = arith.constant 0 : index
      %c0_20 = arith.constant 0 : index
      %27 = vector.load %arg3[%c0_19, %c0_20] : memref<8x1xf32, #tpu.memory_space<vmem>>, vector<8x1xf32>
      tpu.vector_store %arg3[%c0_19, %c0_20], %26 {strides = array<i32>} : memref<8x1xf32, #tpu.memory_space<vmem>>, vector<8x1xf32>,
    } else {
    }
    return
  }
  func.func @transform_0(%arg0: i32, %arg1: i32) -> (i32, i32) {
    %c0_i32 = arith.constant 0 : i32
    return %arg0, %arg1 : i32, i32
  }
  func.func @transform_1(%arg0: i32, %arg1: i32) -> (i32, i32) {
    %c0_i32 = arith.constant 0 : i32
    %c0_i32_0 = arith.constant 0 : i32
    return %arg0, %c0_i32 : i32, i32
  }
}

</mosaic_0001>

<llo_original>
// kernel: tpu_custom_call.1
$region0: #{tpu_custom_call.1}
  #allocation0 [shape = 'u32[]', space=smem, size = 0x4, offset = 0x4, fixed_abs, tag = 'smem constant byte address 0x4 - core index']
  #allocation1 [shape = 'u32[72,128]{1,0:T(1,128)}', space=vmem, size = 0x9000, scoped, tag = 'internal scratch']
  #allocation2 [shape = 'f32[8,1]{1,0:T(8,128)}', space=vmem, size = 0x1000, scoped, tag = 'scratch operand']
  #allocation3 [shape = 'f32[8,1]{1,0:T(8,128)}', space=vmem, size = 0x1000, scoped, tag = 'scratch operand']
  %s0 = inlined_call_operand.hbm [shape: f32[8,256], index: 0, kind: input, shape index: {}]
  %s1 = inlined_call_operand.vmem [shape: f32[8,1], index: 1, kind: output, shape index: {}]
  %s2 = sld [smem:[#allocation0]]
  $region26: #{tpu_custom_call.1} parent=0
    _
  %s4 = ssub.s32 1, %s2
  %s5 = scalar_select 0, %s4, %s2
  $region1: #{tpu_custom_call.1} parent=0
    #allocation4 [shape = 'u8[8192]{0}', space=vmem, size = 0x2000, scoped, tag = 'input window, operand 0, single buffered']
    #allocation5 [shape = 's32[1]{0}', space=sflag, size = 0x4, scoped, tag = 'scoped memory for tpu_custom_call.1']
    %6 = vsyncpa [#allocation5], 0
    // Predicated region
    $region2: #{tpu_custom_call.1} parent=1 // pred_check
      _
    $region3: #{tpu_custom_call.1} parent=1 // pred_check_branch
      %8 = sbr.rel (0) target = $region5
    $region4: #{tpu_custom_call.1} parent=1 // pred_region
      %10 = vsyncadd [#allocation5], 0
      %s12 = sshll.u32 %s0, 4
      %s13 = int_to_ptr.hbm [resolvable:$true] %s12
      %s14 = sshll.u32 [#allocation4], 4
      %s15 = int_to_ptr.vmem [resolvable:$true] %s14
      %17 = dma.hbm_to_vmem [thread:$0]  %s13, 256, %s15, [#allocation5]
    $region5: #{tpu_custom_call.1} parent=1 // pred_fallthru
      _
    // Predicated region
    $region6: #{tpu_custom_call.1} parent=1 // pred_check
      _
    $region7: #{tpu_custom_call.1} parent=1 // pred_check_branch
      %19 = sbr.rel (0) target = $region9
    $region8: #{tpu_custom_call.1} parent=1 // pred_region
      %21 = dma.done [#allocation5], 256
    $region9: #{tpu_custom_call.1} parent=1 // pred_fallthru
      _
    %p22 = scmp.eq.s32.totalorder 0, 0
    // Predicated region
    $region10: #{tpu_custom_call.1} parent=1 // pred_check
      %p23 = pneg %p22
    $region11: #{tpu_custom_call.1} parent=1 // pred_check_branch
      %25 = sbr.rel (%p23) target = $region13
    $region12: #{tpu_custom_call.1} parent=1 // pred_region
      %vm26 = vcmask 7168
      %27 = vst.msk [vmem:[#allocation2] sm:$0xff] %vm26, 0.0
      %28 = vst.msk [vmem:[#allocation3] sm:$0xff] %vm26, -inf
    $region13: #{tpu_custom_call.1} parent=1 // pred_fallthru
      _
    %v29 = vld [vmem:[#allocation4] sm:$0xff]
    %v30 = vld [vmem:[#allocation4 + $0x8] sm:$0xff]
    %v31 = vld [vmem:[#allocation2] sm:$0xff]
    %v32 = vadd.f32 %v29, %v30
    %33 = vadd.xlane.f32.xlu0 %v32
    %v34 = vpop.xlane.xlu0 %33
    %v35 = vadd.f32 %v31, %v34
    %vm36 = vcmask 7168
    %37 = vst.msk [vmem:[#allocation2] sm:$0xff] %vm36, %v35
    %v38 = vld [vmem:[#allocation3] sm:$0xff]
    %v39 = vmax.f32 %v29, %v30
    %40 = vmax.xlane.f32.xlu0 %v39
    %v41 = vpop.xlane.xlu0 %40
    %v42 = vmax.f32 %v38, %v41
    %43 = vst.msk [vmem:[#allocation3] sm:$0xff] %vm36, %v42
    // Predicated region
    $region14: #{tpu_custom_call.1} parent=1 // pred_check
      %p44 = pneg %p22
    $region15: #{tpu_custom_call.1} parent=1 // pred_check_branch
      %46 = sbr.rel (%p44) target = $region17
    $region16: #{tpu_custom_call.1} parent=1 // pred_region
      %v47 = vld [vmem:[#allocation2] sm:$0xff]
      %v48 = vmul.f32 %v47, 0.00390625
      %v49 = vld [vmem:[#allocation3] sm:$0xff]
      %v50 = vadd.f32 %v48, %v49
      %v51 = vxor.u32 %v50, 2147483648
      %v52 = vmul.f32 %v51, 1.442695
      %v53 = vpow.pop %v52
      %v54 = vadd.f32 %v53, 1.0
      %v55 = vrcp.pop %v54
      %v56 = vmul.f32 %v54, %v55
      %v57 = vsub.f32 1.0, %v56
      %v58 = vmul.f32 %v55, %v57
      %v59 = vadd.f32 %v55, %v58
      %vm60 = vweird.f32 %v54
      %vm61 = vweird.f32 %v55
      %vm62 = vmor %vm60, %vm61
      %v63 = vsel %vm62, %v55, %v59
      %v64 = vand.u32 2147483647, %v54
      %vm65 = vcmp.eq.f32.partialorder %v64, 8.507059e+37
      %v66 = vand.u32 %v54, 2147483648
      %v67 = vor.u32 1.1754944e-38, %v66
      %v68 = vsel %vm65, %v67, %v63
      %v69 = vmul.f32 1.0, %v68
      %70 = vst.msk [vmem:[%s1] sm:$0xff] %vm36, %v69
    $region17: #{tpu_custom_call.1} parent=1 // pred_fallthru
      _
    // Predicated region
    $region18: #{tpu_custom_call.1} parent=1 // pred_check
      _
    $region19: #{tpu_custom_call.1} parent=1 // pred_check_branch
      %72 = sbr.rel (0) target = $region21
    $region20: #{tpu_custom_call.1} parent=1 // pred_region
      _
    $region21: #{tpu_custom_call.1} parent=1 // pred_fallthru
      _
    // Predicated region
    $region22: #{tpu_custom_call.1} parent=1 // pred_check
      _
    $region23: #{tpu_custom_call.1} parent=1 // pred_check_branch
      %74 = sbr.rel (0) target = $region25
    $region24: #{tpu_custom_call.1} parent=1 // pred_region
      _
    $region25: #{tpu_custom_call.1} parent=1 // pred_fallthru
      _
    %75 = vsyncpa [#allocation5], 1

</llo_original>
